<compile_context>
chip_gen: v5e
topology: v5e:2x2
jax: 0.10.0
libtpu: 0.0.40
codegen_flags: <defaults>
</compile_context>

<pallas_src>
import jax
import jax.numpy as jnp
import numpy as np
from jax.experimental import pallas as pl
from jax.experimental.pallas import tpu as pltpu

# ------------------------- model hyper-parameters --------------------------
B = 8          # batch size (sublane aligned)
X_SIZE = 16    # latent variable x dim (= input feature dim of fcStack)
W_SIZE = 8     # latent variable w dim
HIDDEN = 32    # hidden layer dim
K = 4          # number of clusters

PAD_OUT = 128                  # lane width of every packed layer output
W_ROWS = 2 * HIDDEN            # fan-in padding (max fused fan-in = 64)
N_LAYERS = 8                   # packed (weight, bias) pairs after fusion
OUT_W = 384                    # output slab width: three 128-lane stores

# lane offsets inside the fused encoder-head output (= output slab part 1)
L_MU_W = 0
L_MU_X = W_SIZE                      # 8
L_LV_X = W_SIZE + X_SIZE             # 24
L_LV_W = W_SIZE + 2 * X_SIZE         # 40
L_QZ = 2 * W_SIZE + 2 * X_SIZE       # 48

# output slab parts
O_PX = 128                           # lanes 128:256 = mu_px(64) | logvar_px(64)
O_Y = 256 + HIDDEN                   # lanes 288:320 = Y (part 3 lanes 256:384)


# ------------------------------- the kernel --------------------------------
def gmvae_kernel(x_ref, w_ref, b_ref, out_ref):
    def lin(a, i, rows):
        # a: [B, rows] activation; weight block i rows 0:rows; bias pre-broadcast.
        w = w_ref[i, 0:rows, :]                              # [rows, 128]
        return jnp.dot(a, w, preferred_element_type=jnp.float32) + b_ref[i]

    x = x_ref[...]                                           # [B, X_SIZE]

    # ---------------- encoder: fcStack = (Linear, ReLU) x 3 ----------------
    h0 = jnp.maximum(lin(x, 0, X_SIZE), 0.0)
    h1 = jnp.maximum(lin(h0[:, :HIDDEN], 1, HIDDEN), 0.0)
    h2 = jnp.maximum(lin(h1[:, :HIDDEN], 2, HIDDEN), 0.0)

    # ----- fused encoder heads: [mu_w | mu_x | logvar_x | logvar_w | qz] ----
    h3 = lin(h2[:, :HIDDEN], 3, HIDDEN)                      # [B, 128]

    # in-place masked softmax over the qz-logit lanes (48:52)
    lane = jax.lax.broadcasted_iota(jnp.int32, h3.shape, 1)
    qz_mask = (lane >= L_QZ) & (lane < L_QZ + K)
    m = jnp.max(jnp.where(qz_mask, h3, -jnp.inf), axis=-1, keepdims=True)
    e = jnp.exp(jnp.where(qz_mask, h3 - m, -jnp.inf))
    qz_full = e * pl.reciprocal(jnp.sum(e, axis=-1, keepdims=True), approx=False)
    enc_out = jnp.where(qz_mask, qz_full, h3)

    # -------- fused prior|decoder stacks (block-diagonal weights) ----------
    # input lanes 0:24 of h3 are already [w_sample(8) | x_sample(16)] (eval mode)
    h4 = jnp.maximum(lin(h3[:, :W_SIZE + X_SIZE], 4, W_SIZE + X_SIZE), 0.0)
    h5 = jnp.maximum(lin(h4[:, :2 * HIDDEN], 5, 2 * HIDDEN), 0.0)
    h6 = lin(h5[:, :2 * HIDDEN], 6, 2 * HIDDEN)              # [B,128]: hp|Y|0
    h6a = jnp.where(lane < HIDDEN, jnp.tanh(h6), h6)         # tanh on prior lanes only

    # fused K-cluster prior heads: [mu_px_0..K-1 | logvar_px_0..K-1] (128 lanes)
    px = lin(h6a[:, :HIDDEN], 7, HIDDEN)                     # [B, 128]

    # --------------- three aligned, unmasked 128-lane stores ---------------
    out_ref[:, 0:128] = enc_out
    out_ref[:, 128:256] = px
    out_ref[:, 256:384] = h6a                                # lanes 32:64 = Y


# ------------------------------ param init ---------------------------------
def _linear_init(key, fan_in, fan_out):
    k1, k2 = jax.random.split(key)
    bound = 1.0 / np.sqrt(fan_in)
    w = jax.random.uniform(k1, (fan_in, fan_out), jnp.float32, -bound, bound)
    b = jax.random.uniform(k2, (fan_out,), jnp.float32, -bound, bound)
    return w, b


def init_params(key):
    keys = iter(jax.random.split(key, 32))
    p = {}
    p["fc1"] = _linear_init(next(keys), X_SIZE, HIDDEN)
    p["fc2"] = _linear_init(next(keys), HIDDEN, HIDDEN)
    p["fc3"] = _linear_init(next(keys), HIDDEN, HIDDEN)
    p["mu_x"] = _linear_init(next(keys), HIDDEN, X_SIZE)
    p["logvar_x"] = _linear_init(next(keys), HIDDEN, X_SIZE)
    p["mu_w"] = _linear_init(next(keys), HIDDEN, W_SIZE)
    p["logvar_w"] = _linear_init(next(keys), HIDDEN, W_SIZE)
    p["qz"] = _linear_init(next(keys), HIDDEN, K)
    p["p1"] = _linear_init(next(keys), W_SIZE, HIDDEN)
    p["p2"] = _linear_init(next(keys), HIDDEN, HIDDEN)
    p["p3"] = _linear_init(next(keys), HIDDEN, HIDDEN)
    p["mu_px"] = [_linear_init(next(keys), HIDDEN, X_SIZE) for _ in range(K)]
    p["logvar_px"] = [_linear_init(next(keys), HIDDEN, X_SIZE) for _ in range(K)]
    p["d1"] = _linear_init(next(keys), X_SIZE, HIDDEN)
    p["d2"] = _linear_init(next(keys), HIDDEN, HIDDEN)
    p["d3"] = _linear_init(next(keys), HIDDEN, HIDDEN)
    return p


def pack_params(p, batch):
    """Pack into a [8,64,128] weight slab and a pre-broadcast [8,B,128] bias slab."""
    W = np.zeros((N_LAYERS, W_ROWS, PAD_OUT), np.float32)
    Bv = np.zeros((N_LAYERS, PAD_OUT), np.float32)

    def put(i, wb, row0, col0):
        w, b = np.asarray(wb[0]), np.asarray(wb[1])
        W[i, row0:row0 + w.shape[0], col0:col0 + w.shape[1]] = w
        Bv[i, col0:col0 + b.shape[0]] = b

    # encoder fcStack
    put(0, p["fc1"], 0, 0)
    put(1, p["fc2"], 0, 0)
    put(2, p["fc3"], 0, 0)
    # fused encoder heads, column order = final output layout
    put(3, p["mu_w"], 0, L_MU_W)
    put(3, p["mu_x"], 0, L_MU_X)
    put(3, p["logvar_x"], 0, L_LV_X)
    put(3, p["logvar_w"], 0, L_LV_W)
    put(3, p["qz"], 0, L_QZ)
    # block-diagonal fused prior | decoder stacks
    put(4, p["p1"], 0, 0)                 # w_sample rows 0:8  -> prior hidden cols 0:32
    put(4, p["d1"], W_SIZE, HIDDEN)       # x_sample rows 8:24 -> decoder hidden cols 32:64
    put(5, p["p2"], 0, 0)
    put(5, p["d2"], HIDDEN, HIDDEN)
    put(6, p["p3"], 0, 0)
    put(6, p["d3"], HIDDEN, HIDDEN)
    # fused K-cluster prior heads: [mu_px_0..3 | logvar_px_0..3]
    for k in range(K):
        put(7, p["mu_px"][k], 0, k * X_SIZE)
        put(7, p["logvar_px"][k], 0, K * X_SIZE + k * X_SIZE)

    w_slab = jnp.asarray(W)                                             # [8, 64, 128]
    b_slab = jnp.asarray(
        np.broadcast_to(Bv[:, None, :], (N_LAYERS, batch, PAD_OUT)).copy())  # [8, B, 128]
    return w_slab, b_slab


# -------------------------------- wrapper -----------------------------------
def gmvae_forward(X, w_slab, b_slab):
    b = X.shape[0]
    vmem = pl.BlockSpec(memory_space=pltpu.MemorySpace.VMEM)
    out = pl.pallas_call(
        gmvae_kernel,
        out_shape=jax.ShapeDtypeStruct((b, OUT_W), jnp.float32),
        in_specs=[vmem, vmem, vmem],
        out_specs=vmem,
    )(X, w_slab, b_slab)

    mu_w = out[:, L_MU_W:L_MU_W + W_SIZE]
    mu_x = out[:, L_MU_X:L_MU_X + X_SIZE]
    logvar_x = out[:, L_LV_X:L_LV_X + X_SIZE]
    logvar_w = out[:, L_LV_W:L_LV_W + W_SIZE]
    qz = out[:, L_QZ:L_QZ + K]
    mu_px = out[:, O_PX:O_PX + K * X_SIZE].reshape(b, K, X_SIZE)
    logvar_px = out[:, O_PX + K * X_SIZE:O_PX + 2 * K * X_SIZE].reshape(b, K, X_SIZE)
    Y = out[:, O_Y:O_Y + HIDDEN]
    x_sample = mu_x          # eval mode: reparameterize(mu_x, logvar_x) == mu_x
    return mu_x, logvar_x, mu_px, logvar_px, qz, Y, mu_w, logvar_w, x_sample


# ----------------------- pure-JAX reference (checking) ----------------------
def gmvae_reference(X, p):
    lin = lambda a, wb: a @ wb[0] + wb[1]
    relu = jax.nn.relu
    h1 = relu(lin(relu(lin(relu(lin(X, p["fc1"])), p["fc2"])), p["fc3"]))
    mu_x, logvar_x = lin(h1, p["mu_x"]), lin(h1, p["logvar_x"])
    mu_w, logvar_w = lin(h1, p["mu_w"]), lin(h1, p["logvar_w"])
    qz = jax.nn.softmax(lin(h1, p["qz"]), axis=1)
    hp = jnp.tanh(lin(relu(lin(relu(lin(mu_w, p["p1"])), p["p2"])), p["p3"]))
    mu_px = jnp.stack([lin(hp, p["mu_px"][i]) for i in range(K)], axis=1)
    logvar_px = jnp.stack([lin(hp, p["logvar_px"][i]) for i in range(K)], axis=1)
    Y = lin(relu(lin(relu(lin(mu_x, p["d1"])), p["d2"])), p["d3"])
    return mu_x, logvar_x, mu_px, logvar_px, qz, Y, mu_w, logvar_w, mu_x


# ---------------------------------- main ------------------------------------
if __name__ == "__main__":
    key = jax.random.PRNGKey(0)
    k_x, k_p = jax.random.split(key)
    X = jax.random.normal(k_x, (B, X_SIZE), dtype=jnp.float32)
    params = init_params(k_p)
    w_slab, b_slab = pack_params(params, B)

    outs = gmvae_forward(X, w_slab, b_slab)
    outs = jax.block_until_ready(outs)

    refs = gmvae_reference(X, params)
    for o, r in zip(outs, refs):
        assert o.shape == r.shape and o.dtype == r.dtype
        np.testing.assert_allclose(np.asarray(o), np.asarray(r),
                                   rtol=1e-5, atol=1e-5)

    print("KERNEL_OK")
</pallas_src>

<mosaic_0001>
module attributes {stable_mosaic.version = 11 : i64} {
  func.func @gmvae_kernel(%arg0: memref<8x16xf32, #tpu.memory_space<vmem>>, %arg1: memref<8x64x128xf32, #tpu.memory_space<vmem>>, %arg2: memref<8x8x128xf32, #tpu.memory_space<vmem>>, %arg3: memref<8x384xf32, #tpu.memory_space<vmem>>) attributes {dimension_semantics = [], scalar_prefetch = 0 : i64, scratch_operands = 0 : i64, tpu.core_type = #tpu.core_type<tc>} {
    %c0 = arith.constant 0 : index
    %c0_0 = arith.constant 0 : index
    %0 = vector.load %arg0[%c0, %c0_0] : memref<8x16xf32, #tpu.memory_space<vmem>>, vector<8x16xf32>
    %c0_1 = arith.constant 0 : index
    %c0_2 = arith.constant 0 : index
    %c0_3 = arith.constant 0 : index
    %1 = vector.load %arg1[%c0_1, %c0_2, %c0_3] : memref<8x64x128xf32, #tpu.memory_space<vmem>>, vector<1x16x128xf32>
    %2 = vector.shape_cast %1 : vector<1x16x128xf32> to vector<16x128xf32>
    %cst = arith.constant dense<0.000000e+00> : vector<8x128xf32>
    %3 = tpu.matmul %0, %2, %cst {dimension_numbers = #tpu.dot_dimension_numbers<[1], [0], [0], [1], [0, 0, 1, 1], [], []>} : vector<8x16xf32>, vector<16x128xf32>, vector<8x128xf32> -> vector<8x128xf32>
    %c0_4 = arith.constant 0 : index
    %c0_5 = arith.constant 0 : index
    %c0_6 = arith.constant 0 : index
    %4 = vector.load %arg2[%c0_4, %c0_5, %c0_6] : memref<8x8x128xf32, #tpu.memory_space<vmem>>, vector<1x8x128xf32>
    %5 = vector.shape_cast %4 : vector<1x8x128xf32> to vector<8x128xf32>
    %6 = arith.addf %3, %5 : vector<8x128xf32>
    %cst_7 = arith.constant 0.000000e+00 : f32
    %7 = vector.broadcast %cst_7 : f32 to vector<8x128xf32>
    %8 = arith.maximumf %6, %7 : vector<8x128xf32>
    %9 = vector.extract_strided_slice %8 {offsets = [0, 0], sizes = [8, 32], strides = [1, 1]} : vector<8x128xf32> to vector<8x32xf32>
    %c1 = arith.constant 1 : index
    %c0_8 = arith.constant 0 : index
    %c0_9 = arith.constant 0 : index
    %10 = vector.load %arg1[%c1, %c0_8, %c0_9] : memref<8x64x128xf32, #tpu.memory_space<vmem>>, vector<1x32x128xf32>
    %11 = vector.shape_cast %10 : vector<1x32x128xf32> to vector<32x128xf32>
    %cst_10 = arith.constant dense<0.000000e+00> : vector<8x128xf32>
    %12 = tpu.matmul %9, %11, %cst_10 {dimension_numbers = #tpu.dot_dimension_numbers<[1], [0], [0], [1], [0, 0, 1, 1], [], []>} : vector<8x32xf32>, vector<32x128xf32>, vector<8x128xf32> -> vector<8x128xf32>
    %c1_11 = arith.constant 1 : index
    %c0_12 = arith.constant 0 : index
    %c0_13 = arith.constant 0 : index
    %13 = vector.load %arg2[%c1_11, %c0_12, %c0_13] : memref<8x8x128xf32, #tpu.memory_space<vmem>>, vector<1x8x128xf32>
    %14 = vector.shape_cast %13 : vector<1x8x128xf32> to vector<8x128xf32>
    %15 = arith.addf %12, %14 : vector<8x128xf32>
    %cst_14 = arith.constant 0.000000e+00 : f32
    %16 = vector.broadcast %cst_14 : f32 to vector<8x128xf32>
    %17 = arith.maximumf %15, %16 : vector<8x128xf32>
    %18 = vector.extract_strided_slice %17 {offsets = [0, 0], sizes = [8, 32], strides = [1, 1]} : vector<8x128xf32> to vector<8x32xf32>
    %c2 = arith.constant 2 : index
    %c0_15 = arith.constant 0 : index
    %c0_16 = arith.constant 0 : index
    %19 = vector.load %arg1[%c2, %c0_15, %c0_16] : memref<8x64x128xf32, #tpu.memory_space<vmem>>, vector<1x32x128xf32>
    %20 = vector.shape_cast %19 : vector<1x32x128xf32> to vector<32x128xf32>
    %cst_17 = arith.constant dense<0.000000e+00> : vector<8x128xf32>
    %21 = tpu.matmul %18, %20, %cst_17 {dimension_numbers = #tpu.dot_dimension_numbers<[1], [0], [0], [1], [0, 0, 1, 1], [], []>} : vector<8x32xf32>, vector<32x128xf32>, vector<8x128xf32> -> vector<8x128xf32>
    %c2_18 = arith.constant 2 : index
    %c0_19 = arith.constant 0 : index
    %c0_20 = arith.constant 0 : index
    %22 = vector.load %arg2[%c2_18, %c0_19, %c0_20] : memref<8x8x128xf32, #tpu.memory_space<vmem>>, vector<1x8x128xf32>
    %23 = vector.shape_cast %22 : vector<1x8x128xf32> to vector<8x128xf32>
    %24 = arith.addf %21, %23 : vector<8x128xf32>
    %cst_21 = arith.constant 0.000000e+00 : f32
    %25 = vector.broadcast %cst_21 : f32 to vector<8x128xf32>
    %26 = arith.maximumf %24, %25 : vector<8x128xf32>
    %27 = vector.extract_strided_slice %26 {offsets = [0, 0], sizes = [8, 32], strides = [1, 1]} : vector<8x128xf32> to vector<8x32xf32>
    %c3 = arith.constant 3 : index
    %c0_22 = arith.constant 0 : index
    %c0_23 = arith.constant 0 : index
    %28 = vector.load %arg1[%c3, %c0_22, %c0_23] : memref<8x64x128xf32, #tpu.memory_space<vmem>>, vector<1x32x128xf32>
    %29 = vector.shape_cast %28 : vector<1x32x128xf32> to vector<32x128xf32>
    %cst_24 = arith.constant dense<0.000000e+00> : vector<8x128xf32>
    %30 = tpu.matmul %27, %29, %cst_24 {dimension_numbers = #tpu.dot_dimension_numbers<[1], [0], [0], [1], [0, 0, 1, 1], [], []>} : vector<8x32xf32>, vector<32x128xf32>, vector<8x128xf32> -> vector<8x128xf32>
    %c3_25 = arith.constant 3 : index
    %c0_26 = arith.constant 0 : index
    %c0_27 = arith.constant 0 : index
    %31 = vector.load %arg2[%c3_25, %c0_26, %c0_27] : memref<8x8x128xf32, #tpu.memory_space<vmem>>, vector<1x8x128xf32>
    %32 = vector.shape_cast %31 : vector<1x8x128xf32> to vector<8x128xf32>
    %33 = arith.addf %30, %32 : vector<8x128xf32>
    %34 = tpu.iota {dimensions = array<i32: 1>} : vector<8x128xi32>
    %c48_i32 = arith.constant 48 : i32
    %35 = vector.broadcast %c48_i32 : i32 to vector<8x128xi32>
    %36 = arith.cmpi sge, %34, %35 : vector<8x128xi32>
    %c52_i32 = arith.constant 52 : i32
    %37 = vector.broadcast %c52_i32 : i32 to vector<8x128xi32>
    %38 = arith.cmpi slt, %34, %37 : vector<8x128xi32>
    %39 = arith.andi %36, %38 : vector<8x128xi1>
    %cst_28 = arith.constant 0xFF800000 : f32
    %40 = vector.broadcast %cst_28 : f32 to vector<8x128xf32>
    %41 = arith.select %39, %33, %40 : vector<8x128xi1>, vector<8x128xf32>
    %cst_29 = arith.constant dense<0xFF800000> : vector<8xf32>
    %42 = vector.multi_reduction <maximumf>, %41, %cst_29 [1] : vector<8x128xf32> to vector<8xf32>
    %43 = vector.shape_cast %42 : vector<8xf32> to vector<8x1xf32>
    %44 = vector.broadcast %43 : vector<8x1xf32> to vector<8x128xf32>
    %45 = arith.subf %33, %44 : vector<8x128xf32>
    %cst_30 = arith.constant 0xFF800000 : f32
    %46 = vector.broadcast %cst_30 : f32 to vector<8x128xf32>
    %47 = arith.select %39, %45, %46 : vector<8x128xi1>, vector<8x128xf32>
    %48 = math.exp %47 : vector<8x128xf32>
    %cst_31 = arith.constant dense<0.000000e+00> : vector<8xf32>
    %49 = vector.multi_reduction <add>, %48, %cst_31 [1] : vector<8x128xf32> to vector<8xf32>
    %50 = vector.shape_cast %49 : vector<8xf32> to vector<8x1xf32>
    %51 = tpu.reciprocal %50 : vector<8x1xf32> -> vector<8x1xf32>
    %52 = vector.broadcast %51 : vector<8x1xf32> to vector<8x128xf32>
    %53 = arith.mulf %48, %52 : vector<8x128xf32>
    %54 = arith.select %39, %53, %33 : vector<8x128xi1>, vector<8x128xf32>
    %55 = vector.extract_strided_slice %33 {offsets = [0, 0], sizes = [8, 24], strides = [1, 1]} : vector<8x128xf32> to vector<8x24xf32>
    %c4 = arith.constant 4 : index
    %c0_32 = arith.constant 0 : index
    %c0_33 = arith.constant 0 : index
    %56 = vector.load %arg1[%c4, %c0_32, %c0_33] : memref<8x64x128xf32, #tpu.memory_space<vmem>>, vector<1x24x128xf32>
    %57 = vector.shape_cast %56 : vector<1x24x128xf32> to vector<24x128xf32>
    %cst_34 = arith.constant dense<0.000000e+00> : vector<8x128xf32>
    %58 = tpu.matmul %55, %57, %cst_34 {dimension_numbers = #tpu.dot_dimension_numbers<[1], [0], [0], [1], [0, 0, 1, 1], [], []>} : vector<8x24xf32>, vector<24x128xf32>, vector<8x128xf32> -> vector<8x128xf32>
    %c4_35 = arith.constant 4 : index
    %c0_36 = arith.constant 0 : index
    %c0_37 = arith.constant 0 : index
    %59 = vector.load %arg2[%c4_35, %c0_36, %c0_37] : memref<8x8x128xf32, #tpu.memory_space<vmem>>, vector<1x8x128xf32>
    %60 = vector.shape_cast %59 : vector<1x8x128xf32> to vector<8x128xf32>
    %61 = arith.addf %58, %60 : vector<8x128xf32>
    %cst_38 = arith.constant 0.000000e+00 : f32
    %62 = vector.broadcast %cst_38 : f32 to vector<8x128xf32>
    %63 = arith.maximumf %61, %62 : vector<8x128xf32>
    %64 = vector.extract_strided_slice %63 {offsets = [0, 0], sizes = [8, 64], strides = [1, 1]} : vector<8x128xf32> to vector<8x64xf32>
    %c5 = arith.constant 5 : index
    %c0_39 = arith.constant 0 : index
    %c0_40 = arith.constant 0 : index
    %65 = vector.load %arg1[%c5, %c0_39, %c0_40] : memref<8x64x128xf32, #tpu.memory_space<vmem>>, vector<1x64x128xf32>
    %66 = vector.shape_cast %65 : vector<1x64x128xf32> to vector<64x128xf32>
    %cst_41 = arith.constant dense<0.000000e+00> : vector<8x128xf32>
    %67 = tpu.matmul %64, %66, %cst_41 {dimension_numbers = #tpu.dot_dimension_numbers<[1], [0], [0], [1], [0, 0, 1, 1], [], []>} : vector<8x64xf32>, vector<64x128xf32>, vector<8x128xf32> -> vector<8x128xf32>
    %c5_42 = arith.constant 5 : index
    %c0_43 = arith.constant 0 : index
    %c0_44 = arith.constant 0 : index
    %68 = vector.load %arg2[%c5_42, %c0_43, %c0_44] : memref<8x8x128xf32, #tpu.memory_space<vmem>>, vector<1x8x128xf32>
    %69 = vector.shape_cast %68 : vector<1x8x128xf32> to vector<8x128xf32>
    %70 = arith.addf %67, %69 : vector<8x128xf32>
    %cst_45 = arith.constant 0.000000e+00 : f32
    %71 = vector.broadcast %cst_45 : f32 to vector<8x128xf32>
    %72 = arith.maximumf %70, %71 : vector<8x128xf32>
    %73 = vector.extract_strided_slice %72 {offsets = [0, 0], sizes = [8, 64], strides = [1, 1]} : vector<8x128xf32> to vector<8x64xf32>
    %c6 = arith.constant 6 : index
    %c0_46 = arith.constant 0 : index
    %c0_47 = arith.constant 0 : index
    %74 = vector.load %arg1[%c6, %c0_46, %c0_47] : memref<8x64x128xf32, #tpu.memory_space<vmem>>, vector<1x64x128xf32>
    %75 = vector.shape_cast %74 : vector<1x64x128xf32> to vector<64x128xf32>
    %cst_48 = arith.constant dense<0.000000e+00> : vector<8x128xf32>
    %76 = tpu.matmul %73, %75, %cst_48 {dimension_numbers = #tpu.dot_dimension_numbers<[1], [0], [0], [1], [0, 0, 1, 1], [], []>} : vector<8x64xf32>, vector<64x128xf32>, vector<8x128xf32> -> vector<8x128xf32>
    %c6_49 = arith.constant 6 : index
    %c0_50 = arith.constant 0 : index
    %c0_51 = arith.constant 0 : index
    %77 = vector.load %arg2[%c6_49, %c0_50, %c0_51] : memref<8x8x128xf32, #tpu.memory_space<vmem>>, vector<1x8x128xf32>
    %78 = vector.shape_cast %77 : vector<1x8x128xf32> to vector<8x128xf32>
    %79 = arith.addf %76, %78 : vector<8x128xf32>
    %c32_i32 = arith.constant 32 : i32
    %80 = vector.broadcast %c32_i32 : i32 to vector<8x128xi32>
    %81 = arith.cmpi slt, %34, %80 : vector<8x128xi32>
    %82 = math.tanh %79 : vector<8x128xf32>
    %83 = arith.select %81, %82, %79 : vector<8x128xi1>, vector<8x128xf32>
    %84 = vector.extract_strided_slice %83 {offsets = [0, 0], sizes = [8, 32], strides = [1, 1]} : vector<8x128xf32> to vector<8x32xf32>
    %c7 = arith.constant 7 : index
    %c0_52 = arith.constant 0 : index
    %c0_53 = arith.constant 0 : index
    %85 = vector.load %arg1[%c7, %c0_52, %c0_53] : memref<8x64x128xf32, #tpu.memory_space<vmem>>, vector<1x32x128xf32>
    %86 = vector.shape_cast %85 : vector<1x32x128xf32> to vector<32x128xf32>
    %cst_54 = arith.constant dense<0.000000e+00> : vector<8x128xf32>
    %87 = tpu.matmul %84, %86, %cst_54 {dimension_numbers = #tpu.dot_dimension_numbers<[1], [0], [0], [1], [0, 0, 1, 1], [], []>} : vector<8x32xf32>, vector<32x128xf32>, vector<8x128xf32> -> vector<8x128xf32>
    %c7_55 = arith.constant 7 : index
    %c0_56 = arith.constant 0 : index
    %c0_57 = arith.constant 0 : index
    %88 = vector.load %arg2[%c7_55, %c0_56, %c0_57] : memref<8x8x128xf32, #tpu.memory_space<vmem>>, vector<1x8x128xf32>
    %89 = vector.shape_cast %88 : vector<1x8x128xf32> to vector<8x128xf32>
    %90 = arith.addf %87, %89 : vector<8x128xf32>
    %c0_58 = arith.constant 0 : index
    %c0_59 = arith.constant 0 : index
    %91 = vector.load %arg3[%c0_58, %c0_59] : memref<8x384xf32, #tpu.memory_space<vmem>>, vector<8x128xf32>
    tpu.vector_store %arg3[%c0_58, %c0_59], %54 {strides = array<i32>} : memref<8x384xf32, #tpu.memory_space<vmem>>, vector<8x128xf32>,
    %c0_60 = arith.constant 0 : index
    %c128 = arith.constant 128 : index
    %92 = vector.load %arg3[%c0_60, %c128] : memref<8x384xf32, #tpu.memory_space<vmem>>, vector<8x128xf32>
    tpu.vector_store %arg3[%c0_60, %c128], %90 {strides = array<i32>} : memref<8x384xf32, #tpu.memory_space<vmem>>, vector<8x128xf32>,
    %c0_61 = arith.constant 0 : index
    %c256 = arith.constant 256 : index
    %93 = vector.load %arg3[%c0_61, %c256] : memref<8x384xf32, #tpu.memory_space<vmem>>, vector<8x128xf32>
    tpu.vector_store %arg3[%c0_61, %c256], %83 {strides = array<i32>} : memref<8x384xf32, #tpu.memory_space<vmem>>, vector<8x128xf32>,
    return
  }
}

</mosaic_0001>

<llo_original>
// kernel: tpu_custom_call.1
$region0: #{tpu_custom_call.1}
  #allocation0 [shape = 'u32[]', space=smem, size = 0x4, offset = 0x4, fixed_abs, tag = 'smem constant byte address 0x4 - core index']
  #allocation1 [shape = 'u32[72,128]{1,0:T(1,128)}', space=vmem, size = 0x9000, scoped, tag = 'internal scratch']
  %s0 = inlined_call_operand.hbm [shape: f32[8,16], index: 0, kind: input, shape index: {}]
  %s1 = inlined_call_operand.hbm [shape: f32[8,64,128], index: 1, kind: input, shape index: {}]
  %s2 = inlined_call_operand.hbm [shape: f32[8,8,128], index: 2, kind: input, shape index: {}]
  %s3 = inlined_call_operand.hbm [shape: f32[8,384], index: 3, kind: output, shape index: {}]
  %s4 = sld [smem:[#allocation0]]
  $region34: #{tpu_custom_call.1} parent=0
    _
  %s6 = ssub.s32 1, %s4
  %s7 = scalar_select 0, %s6, %s4
  $region1: #{tpu_custom_call.1} parent=0
    #allocation2 [shape = 'u8[4096]{0}', space=vmem, size = 0x1000, scoped, tag = 'input window, operand 0, single buffered']
    #allocation3 [shape = 's32[1]{0}', space=sflag, size = 0x4, scoped, tag = 'scoped memory for tpu_custom_call.1']
    #allocation4 [shape = 's32[1]{0}', space=sflag, size = 0x4, scoped, tag = 'scoped memory for tpu_custom_call.1']
    #allocation5 [shape = 'u8[262144]{0}', space=vmem, size = 0x40000, scoped, tag = 'input window, operand 1, single buffered']
    #allocation6 [shape = 's32[1]{0}', space=sflag, size = 0x4, scoped, tag = 'scoped memory for tpu_custom_call.1']
    #allocation7 [shape = 'u8[32768]{0}', space=vmem, size = 0x8000, scoped, tag = 'input window, operand 2, single buffered']
    #allocation8 [shape = 'u8[12288]{0}', space=vmem, size = 0x3000, scoped, tag = 'output window, operand 0, single buffered']
    %8 = vsyncpa [#allocation3], 0
    %9 = vsyncpa [#allocation6], 0
    %10 = vsyncpa [#allocation4], 0
    // Predicated region
    $region2: #{tpu_custom_call.1} parent=1 // pred_check
      _
    $region3: #{tpu_custom_call.1} parent=1 // pred_check_branch
      %12 = sbr.rel (0) target = $region5
    $region4: #{tpu_custom_call.1} parent=1 // pred_region
      %14 = vsyncadd [#allocation3], 0
      %s16 = sshll.u32 %s0, 4
      %s17 = int_to_ptr.hbm [resolvable:$true] %s16
      %s18 = sshll.u32 [#allocation2], 4
      %s19 = int_to_ptr.vmem [resolvable:$true] %s18
      %21 = dma.hbm_to_vmem [thread:$0]  %s17, 128, %s19, [#allocation3]
    $region5: #{tpu_custom_call.1} parent=1 // pred_fallthru
      _
    // Predicated region
    $region6: #{tpu_custom_call.1} parent=1 // pred_check
      _
    $region7: #{tpu_custom_call.1} parent=1 // pred_check_branch
      %23 = sbr.rel (0) target = $region9
    $region8: #{tpu_custom_call.1} parent=1 // pred_region
      %25 = vsyncadd [#allocation6], 0
      %s26 = sshll.u32 %s1, 4
      %s27 = int_to_ptr.hbm [resolvable:$true] %s26
      %s28 = sshll.u32 [#allocation5], 4
      %s29 = int_to_ptr.vmem [resolvable:$true] %s28
      %34 = dma.hbm_to_vmem [thread:$0]  %s27, 8192, %s29, [#allocation6], 128, 128, 8
    $region9: #{tpu_custom_call.1} parent=1 // pred_fallthru
      _
    // Predicated region
    $region10: #{tpu_custom_call.1} parent=1 // pred_check
      _
    $region11: #{tpu_custom_call.1} parent=1 // pred_check_branch
      %36 = sbr.rel (0) target = $region13
    $region12: #{tpu_custom_call.1} parent=1 // pred_region
      %38 = vsyncadd [#allocation6], 0
      %s39 = sshll.u32 %s2, 4
      %s40 = int_to_ptr.hbm [resolvable:$true] %s39
      %s41 = sshll.u32 [#allocation7], 4
      %s42 = int_to_ptr.vmem [resolvable:$true] %s41
      %47 = dma.hbm_to_vmem [thread:$0]  %s40, 1024, %s42, [#allocation6], 128, 128, 8
    $region13: #{tpu_custom_call.1} parent=1 // pred_fallthru
      _
    // Predicated region
    $region14: #{tpu_custom_call.1} parent=1 // pred_check
      _
    $region15: #{tpu_custom_call.1} parent=1 // pred_check_branch
      %49 = sbr.rel (0) target = $region17
    $region16: #{tpu_custom_call.1} parent=1 // pred_region
      %51 = dma.done [#allocation3], 128
    $region17: #{tpu_custom_call.1} parent=1 // pred_fallthru
      _
    // Predicated region
    $region18: #{tpu_custom_call.1} parent=1 // pred_check
      _
    $region19: #{tpu_custom_call.1} parent=1 // pred_check_branch
      %53 = sbr.rel (0) target = $region21
    $region20: #{tpu_custom_call.1} parent=1 // pred_region
      %55 = dma.done [#allocation6], 8192
    $region21: #{tpu_custom_call.1} parent=1 // pred_fallthru
      _
    // Predicated region
    $region22: #{tpu_custom_call.1} parent=1 // pred_check
      _
    $region23: #{tpu_custom_call.1} parent=1 // pred_check_branch
      %57 = sbr.rel (0) target = $region25
    $region24: #{tpu_custom_call.1} parent=1 // pred_region
      %59 = dma.done [#allocation6], 1024
    $region25: #{tpu_custom_call.1} parent=1 // pred_fallthru
      _
    %v60 = vld [vmem:[#allocation2] sm:$0xff]
    %v61 = vld [vmem:[#allocation5] sm:$0xff]
    %v62 = vld [vmem:[#allocation5 + $0x8] sm:$0xff]
    %v63 = vld [vmem:[#allocation7] sm:$0xff]
    %vm64 = vcmask 130048
    %v66 = vsel %vm64, %v60, 0
    %68 = vmatpush.msra.mxu0 0.0
    %69 = vmatpush.msra.mxu0 0.0
    %70 = vmatpush.msra.mxu0 0.0
    %71 = vmatpush.msra.mxu0 0.0
    %72 = vmatpush.msra.mxu0 0.0
    %73 = vmatpush.msra.mxu0 0.0
    %74 = vmatpush.msra.mxu0 0.0
    %75 = vmatpush.msra.mxu0 0.0
    %76 = vmatpush.msra.mxu0 0.0
    %77 = vmatpush.msra.mxu0 0.0
    %78 = vmatpush.msra.mxu0 0.0
    %79 = vmatpush.msra.mxu0 0.0
    %80 = vmatpush.msra.mxu0 0.0
    %81 = vmatpush.msra.mxu0 0.0
    %82 = vmatpush.msra.mxu0 %v62
    %83 = vmatpush.msra.mxu0 %v61
    %84 = vmatmul.f32.gmra.mxu0 %v66
    %v85 = vpop.f32.mrf.mxu0
    %v86 = vadd.f32 %v63, %v85
    %87 = vdwg.mxu0
    %v88 = vmax.f32 %v86, 0.0
    %s89 = scalar_lea.vmem [#allocation5], 64
    %v90 = vld [vmem:[%s89] sm:$0xff]
    %v91 = vld [vmem:[%s89 + $0x8] sm:$0xff]
    %v92 = vld [vmem:[%s89 + $0x10] sm:$0xff]
    %v93 = vld [vmem:[%s89 + $0x18] sm:$0xff]
    %s94 = scalar_lea.vmem [#allocation7], 8
    %v95 = vld [vmem:[%s94] sm:$0xff]
    %vm96 = vcmask 261120
    %v98 = vsel %vm96, %v88, 0
    %100 = vmatpush.msra.mxu0 0.0
    %101 = vmatpush.msra.mxu0 0.0
    %102 = vmatpush.msra.mxu0 0.0
    %103 = vmatpush.msra.mxu0 0.0
    %104 = vmatpush.msra.mxu0 0.0
    %105 = vmatpush.msra.mxu0 0.0
    %106 = vmatpush.msra.mxu0 0.0
    %107 = vmatpush.msra.mxu0 0.0
    %108 = vmatpush.msra.mxu0 0.0
    %109 = vmatpush.msra.mxu0 0.0
    %110 = vmatpush.msra.mxu0 0.0
    %111 = vmatpush.msra.mxu0 0.0
    %112 = vmatpush.msra.mxu0 %v93
    %113 = vmatpush.msra.mxu0 %v92
    %114 = vmatpush.msra.mxu0 %v91
    %115 = vmatpush.msra.mxu0 %v90
    %116 = vmatmul.f32.gmra.mxu0 %v98
    %v117 = vpop.f32.mrf.mxu0
    %v118 = vadd.f32 %v95, %v117
    %119 = vdwg.mxu0
    %v120 = vmax.f32 %v118, 0.0
    %s121 = scalar_lea.vmem [#allocation5], 128
    %v122 = vld [vmem:[%s121] sm:$0xff]
    %v123 = vld [vmem:[%s121 + $0x8] sm:$0xff]
    %v124 = vld [vmem:[%s121 + $0x10] sm:$0xff]
    %v125 = vld [vmem:[%s121 + $0x18] sm:$0xff]
    %s126 = scalar_lea.vmem [#allocation7], 16
    %v127 = vld [vmem:[%s126] sm:$0xff]
    %v129 = vsel %vm96, %v120, 0
    %131 = vmatpush.msra.mxu0 0.0
    %132 = vmatpush.msra.mxu0 0.0
    %133 = vmatpush.msra.mxu0 0.0
    %134 = vmatpush.msra.mxu0 0.0
    %135 = vmatpush.msra.mxu0 0.0
    %136 = vmatpush.msra.mxu0 0.0
    %137 = vmatpush.msra.mxu0 0.0
    %138 = vmatpush.msra.mxu0 0.0
    %139 = vmatpush.msra.mxu0 0.0
    %140 = vmatpush.msra.mxu0 0.0
    %141 = vmatpush.msra.mxu0 0.0
    %142 = vmatpush.msra.mxu0 0.0
    %143 = vmatpush.msra.mxu0 %v125
    %144 = vmatpush.msra.mxu0 %v124
    %145 = vmatpush.msra.mxu0 %v123
    %146 = vmatpush.msra.mxu0 %v122
    %147 = vmatmul.f32.gmra.mxu0 %v129
    %v148 = vpop.f32.mrf.mxu0
    %v149 = vadd.f32 %v127, %v148
    %150 = vdwg.mxu0
    %v151 = vmax.f32 %v149, 0.0
    %s152 = scalar_lea.vmem [#allocation5], 192
    %v153 = vld [vmem:[%s152] sm:$0xff]
    %v154 = vld [vmem:[%s152 + $0x8] sm:$0xff]
    %v155 = vld [vmem:[%s152 + $0x10] sm:$0xff]
    %v156 = vld [vmem:[%s152 + $0x18] sm:$0xff]
    %s157 = scalar_lea.vmem [#allocation7], 24
    %v158 = vld [vmem:[%s157] sm:$0xff]
    %v160 = vsel %vm96, %v151, 0
    %162 = vmatpush.msra.mxu0 0.0
    %163 = vmatpush.msra.mxu0 0.0
    %164 = vmatpush.msra.mxu0 0.0
    %165 = vmatpush.msra.mxu0 0.0
    %166 = vmatpush.msra.mxu0 0.0
    %167 = vmatpush.msra.mxu0 0.0
    %168 = vmatpush.msra.mxu0 0.0
    %169 = vmatpush.msra.mxu0 0.0
    %170 = vmatpush.msra.mxu0 0.0
    %171 = vmatpush.msra.mxu0 0.0
    %172 = vmatpush.msra.mxu0 0.0
    %173 = vmatpush.msra.mxu0 0.0
    %174 = vmatpush.msra.mxu0 %v156
    %175 = vmatpush.msra.mxu0 %v155
    %176 = vmatpush.msra.mxu0 %v154
    %177 = vmatpush.msra.mxu0 %v153
    %178 = vmatmul.f32.gmra.mxu0 %v160
    %v179 = vpop.f32.mrf.mxu0
    %v180 = vadd.f32 %v158, %v179
    %181 = vdwg.mxu0
    %v182 = vlaneseq
    %v183 = vand.u32 %v182, 127
    %vm184 = vcmp.ge.s32.totalorder %v183, 48
    %vm185 = vcmp.lt.s32.totalorder %v183, 52
    %vm186 = vmand %vm184, %vm185
    %v187 = vsel %vm186, %v180, -inf
    %188 = vmax.xlane.f32.xlu0 %v187
    %v189 = vpop.xlane.xlu0 %188
    %v190 = vsub.f32 %v180, %v189
    %v191 = vsel %vm186, %v190, -inf
    %v192 = vmul.f32 %v191, 1.442695
    %v193 = vpow.pop %v192
    %194 = vadd.xlane.f32.xlu0 %v193
    %v195 = vpop.xlane.xlu0 %194
    %v196 = vrcp.pop %v195
    %v197 = vmul.f32 %v195, %v196
    %v198 = vsub.f32 1.0, %v197
    %v199 = vmul.f32 %v196, %v198
    %v200 = vadd.f32 %v196, %v199
    %vm201 = vweird.f32 %v195
    %vm202 = vweird.f32 %v196
    %vm203 = vmor %vm201, %vm202
    %v204 = vsel %vm203, %v196, %v200
    %v205 = vand.u32 2147483647, %v195
    %vm206 = vcmp.eq.f32.partialorder %v205, 8.507059e+37
    %v207 = vand.u32 %v195, 2147483648
    %v208 = vor.u32 1.1754944e-38, %v207
    %v209 = vsel %vm206, %v208, %v204
    %v210 = vmul.f32 %v193, %v209
    %v211 = vsel %vm186, %v210, %v180
    %s212 = scalar_lea.vmem [#allocation5], 256
    %v213 = vld [vmem:[%s212] sm:$0xff]
    %v214 = vld [vmem:[%s212 + $0x8] sm:$0xff]
    %v215 = vld [vmem:[%s212 + $0x10] sm:$0xff]
    %s216 = scalar_lea.vmem [#allocation7], 32
    %v217 = vld [vmem:[%s216] sm:$0xff]
    %vm218 = vcmask 195584
    %v220 = vsel %vm218, %v180, 0
    %222 = vmatpush.msra.mxu0 0.0
    %223 = vmatpush.msra.mxu0 0.0
    %224 = vmatpush.msra.mxu0 0.0
    %225 = vmatpush.msra.mxu0 0.0
    %226 = vmatpush.msra.mxu0 0.0
    %227 = vmatpush.msra.mxu0 0.0
    %228 = vmatpush.msra.mxu0 0.0
    %229 = vmatpush.msra.mxu0 0.0
    %230 = vmatpush.msra.mxu0 0.0
    %231 = vmatpush.msra.mxu0 0.0
    %232 = vmatpush.msra.mxu0 0.0
    %233 = vmatpush.msra.mxu0 0.0
    %234 = vmatpush.msra.mxu0 0.0
    %235 = vmatpush.msra.mxu0 %v215
    %236 = vmatpush.msra.mxu0 %v214
    %237 = vmatpush.msra.mxu0 %v213
    %238 = vmatmul.f32.gmra.mxu0 %v220
    %v239 = vpop.f32.mrf.mxu0
    %v240 = vadd.f32 %v217, %v239
    %241 = vdwg.mxu0
    %v242 = vmax.f32 %v240, 0.0
    %s243 = scalar_lea.vmem [#allocation5], 320
    %v244 = vld [vmem:[%s243] sm:$0xff]
    %v245 = vld [vmem:[%s243 + $0x8] sm:$0xff]
    %v246 = vld [vmem:[%s243 + $0x10] sm:$0xff]
    %v247 = vld [vmem:[%s243 + $0x18] sm:$0xff]
    %v248 = vld [vmem:[%s243 + $0x20] sm:$0xff]
    %v249 = vld [vmem:[%s243 + $0x28] sm:$0xff]
    %v250 = vld [vmem:[%s243 + $0x30] sm:$0xff]
    %v251 = vld [vmem:[%s243 + $0x38] sm:$0xff]
    %s252 = scalar_lea.vmem [#allocation7], 40
    %v253 = vld [vmem:[%s252] sm:$0xff]
    %vm254 = vcmask 523264
    %v256 = vsel %vm254, %v242, 0
    %258 = vmatpush.msra.mxu0 0.0
    %259 = vmatpush.msra.mxu0 0.0
    %260 = vmatpush.msra.mxu0 0.0
    %261 = vmatpush.msra.mxu0 0.0
    %262 = vmatpush.msra.mxu0 0.0
    %263 = vmatpush.msra.mxu0 0.0
    %264 = vmatpush.msra.mxu0 0.0
    %265 = vmatpush.msra.mxu0 0.0
    %266 = vmatpush.msra.mxu0 %v251
    %267 = vmatpush.msra.mxu0 %v250
    %268 = vmatpush.msra.mxu0 %v249
    %269 = vmatpush.msra.mxu0 %v248
    %270 = vmatpush.msra.mxu0 %v247
    %271 = vmatpush.msra.mxu0 %v246
    %272 = vmatpush.msra.mxu0 %v245
    %273 = vmatpush.msra.mxu0 %v244
    %274 = vmatmul.f32.gmra.mxu0 %v256
    %v275 = vpop.f32.mrf.mxu0
    %v276 = vadd.f32 %v253, %v275
    %277 = vdwg.mxu0
    %v278 = vmax.f32 %v276, 0.0
    %s279 = scalar_lea.vmem [#allocation5], 384
    %v280 = vld [vmem:[%s279] sm:$0xff]
    %v281 = vld [vmem:[%s279 + $0x8] sm:$0xff]
    %v282 = vld [vmem:[%s279 + $0x10] sm:$0xff]
    %v283 = vld [vmem:[%s279 + $0x18] sm:$0xff]
    %v284 = vld [vmem:[%s279 + $0x20] sm:$0xff]
    %v285 = vld [vmem:[%s279 + $0x28] sm:$0xff]
    %v286 = vld [vmem:[%s279 + $0x30] sm:$0xff]
    %v287 = vld [vmem:[%s279 + $0x38] sm:$0xff]
    %s288 = scalar_lea.vmem [#allocation7], 48
    %v289 = vld [vmem:[%s288] sm:$0xff]
    %v291 = vsel %vm254, %v278, 0
    %293 = vmatpush.msra.mxu0 0.0
    %294 = vmatpush.msra.mxu0 0.0
    %295 = vmatpush.msra.mxu0 0.0
    %296 = vmatpush.msra.mxu0 0.0
    %297 = vmatpush.msra.mxu0 0.0
    %298 = vmatpush.msra.mxu0 0.0
    %299 = vmatpush.msra.mxu0 0.0
    %300 = vmatpush.msra.mxu0 0.0
    %301 = vmatpush.msra.mxu0 %v287
    %302 = vmatpush.msra.mxu0 %v286
    %303 = vmatpush.msra.mxu0 %v285
    %304 = vmatpush.msra.mxu0 %v284
    %305 = vmatpush.msra.mxu0 %v283
    %306 = vmatpush.msra.mxu0 %v282
    %307 = vmatpush.msra.mxu0 %v281
    %308 = vmatpush.msra.mxu0 %v280
    %309 = vmatmul.f32.gmra.mxu0 %v291
    %v310 = vpop.f32.mrf.mxu0
    %v311 = vadd.f32 %v289, %v310
    %312 = vdwg.mxu0
    %vm313 = vcmp.lt.s32.totalorder %v183, 32
    %v314 = vtanh.pop %v311
    %v315 = vsel %vm313, %v314, %v311
    %s316 = scalar_lea.vmem [#allocation5], 448
    %v317 = vld [vmem:[%s316] sm:$0xff]
    %v318 = vld [vmem:[%s316 + $0x8] sm:$0xff]
    %v319 = vld [vmem:[%s316 + $0x10] sm:$0xff]
    %v320 = vld [vmem:[%s316 + $0x18] sm:$0xff]
    %s321 = scalar_lea.vmem [#allocation7], 56
    %v322 = vld [vmem:[%s321] sm:$0xff]
    %v324 = vsel %vm96, %v315, 0
    %326 = vmatpush.msra.mxu0 0.0
    %327 = vmatpush.msra.mxu0 0.0
    %328 = vmatpush.msra.mxu0 0.0
    %329 = vmatpush.msra.mxu0 0.0
    %330 = vmatpush.msra.mxu0 0.0
    %331 = vmatpush.msra.mxu0 0.0
    %332 = vmatpush.msra.mxu0 0.0
    %333 = vmatpush.msra.mxu0 0.0
    %334 = vmatpush.msra.mxu0 0.0
    %335 = vmatpush.msra.mxu0 0.0
    %336 = vmatpush.msra.mxu0 0.0
    %337 = vmatpush.msra.mxu0 0.0
    %338 = vmatpush.msra.mxu0 %v320
    %339 = vmatpush.msra.mxu0 %v319
    %340 = vmatpush.msra.mxu0 %v318
    %341 = vmatpush.msra.mxu0 %v317
    %342 = vmatmul.f32.gmra.mxu0 %v324
    %v343 = vpop.f32.mrf.mxu0
    %v344 = vadd.f32 %v322, %v343
    %345 = vdwg.mxu0
    %346 = vst [vmem:[#allocation8] sm:$0xff] %v211
    %347 = vst [vmem:[#allocation8 + $0x8] sm:$0xff] %v344
    %348 = vst [vmem:[#allocation8 + $0x10] sm:$0xff] %v315
    // Predicated region
    $region26: #{tpu_custom_call.1} parent=1 // pred_check
      _
    $region27: #{tpu_custom_call.1} parent=1 // pred_check_branch
      %350 = sbr.rel (0) target = $region29
    $region28: #{tpu_custom_call.1} parent=1 // pred_region
      %352 = vsyncadd [#allocation4], 0
      %s354 = sshll.u32 [#allocation8], 4
      %s355 = int_to_ptr.vmem [resolvable:$true] %s354
      %s356 = sshll.u32 %s3, 4
      %s357 = int_to_ptr.hbm [resolvable:$true] %s356
      %359 = dma.vmem_to_hbm [thread:$0]  %s355, 384, %s357, [#allocation4]
    $region29: #{tpu_custom_call.1} parent=1 // pred_fallthru
      _
    // Predicated region
    $region30: #{tpu_custom_call.1} parent=1 // pred_check
      _
    $region31: #{tpu_custom_call.1} parent=1 // pred_check_branch
      %361 = sbr.rel (0) target = $region33
    $region32: #{tpu_custom_call.1} parent=1 // pred_region
      %363 = dma.done [#allocation4], 384
    $region33: #{tpu_custom_call.1} parent=1 // pred_fallthru
      _
    %364 = vsyncpa [#allocation3], 1
    %365 = vsyncpa [#allocation6], 1
    %366 = vsyncpa [#allocation4], 1

</llo_original>
